<compile_context>
chip_gen: v7x
topology: tpu7x:2x2x1
jax: 0.10.0
libtpu: 0.0.40
codegen_flags: <defaults>
</compile_context>

<pallas_src>
import functools

import jax
import jax.numpy as jnp
from jax import lax
from jax.experimental import pallas as pl
from jax.experimental.pallas import tpu as pltpu

hours = 24 * 7


def _multi_embed_kernel(traj_ref,        # SMEM (N*M*3,) i32 : [user, loc, time'] per row
                        ds_ref,          # VMEM (nb*M, M)   f32 : delta_s rows of this block
                        bound_ref,       # VMEM (nb*M, 1)   i32 : per-row mask bound
                        colj_ref,        # VMEM (1, M*E)    i32 : j index of each out column
                        sel_ref,         # VMEM (M, M*E)    f32 : 0/1 lane-broadcast matrix
                        tab_ref,         # VMEM (8, M*E)    f32 : tiled sl/su/tl/tu tables
                        emb_t_ref,       # VMEM (T, E)      f32
                        emb_l_ref,       # VMEM (L, E)      f32
                        emb_u_ref,       # VMEM (U, E)      f32
                        joint_ref,       # VMEM (nb*M, E)   f32 out
                        delta_ref,       # VMEM (nb*M, M*E) f32 out
                        *, nb, M, E, su, sl, tu, tl):
    n_rows = nb * M

    # ---------------- joint[r] = emb_t(t') + emb_l(loc) + emb_u(user) -------
    # Scalar-driven embedding gather: indices live in SMEM, rows are fetched
    # with dynamic sublane slices.
    base = pl.program_id(0) * n_rows * 3

    def gather_row(r, carry):
        off = base + r * 3
        u_idx = traj_ref[off + 0]
        l_idx = traj_ref[off + 1]
        t_idx = traj_ref[off + 2]        # already remapped to [1, hours]
        row = (emb_t_ref[pl.ds(t_idx, 1), :]
               + emb_l_ref[pl.ds(l_idx, 1), :]
               + emb_u_ref[pl.ds(u_idx, 1), :])           # (1, E)
        joint_ref[pl.ds(r, 1), :] = row
        return carry

    lax.fori_loop(0, n_rows, gather_row, 0)

    # ---------------- delta: vectorized, lane-dense (rows=(n,i), cols=(j,e)) --
    ds = ds_ref[...]                                      # (R, M)
    # Broadcast ds[:, j] across the E lanes of column group j with one small
    # constant 0/1 matmul (exact: one nonzero term per dot product).
    ds_b = jnp.dot(ds, sel_ref[...],
                   preferred_element_type=jnp.float32)    # (R, M*E)

    mask_b = colj_ref[...] < bound_ref[...]               # (R, M*E) bool
    tab = tab_ref[...]                                    # (8, M*E)
    esl = jnp.where(mask_b, tab[1:2, :], tab[0:1, :])
    esu = jnp.where(mask_b, tab[3:4, :], tab[2:3, :])
    etl = jnp.where(mask_b, tab[5:6, :], tab[4:5, :])
    etu = jnp.where(mask_b, tab[7:8, :], tab[6:7, :])

    vsl = ds_b - sl
    vsu = su - ds_b
    vtl = ds_b - tl
    vtu = tu - ds_b
    space = (esl * vsu + esu * vsl) / (su - sl)
    time_ = (etl * vtu + etu * vtl) / (tu - tl)
    delta_ref[...] = (space + time_).astype(delta_ref.dtype)


def multi_embed_forward(traj, mat, traj_len, embed_tables, ex, *, batch_block=256):
    """Pallas equivalent of MultiEmbed.forward -> (joint, delta)."""
    emb_t, emb_l, emb_u, emb_su, emb_sl, emb_tu, emb_tl = embed_tables
    su, sl, tu, tl = (float(v) for v in ex)
    N, M, _ = traj.shape
    E = emb_t.shape[-1]

    nb = min(batch_block, N)
    assert N % nb == 0, "batch_block must divide the batch for this demo"
    grid = (N // nb,)
    rows = nb * M

    # --- tiny integer / table preprocessing (XLA side) ----------------------
    # time-of-week remap (the `traj[:, :, 2] = (t - 1) % hours + 1` line); done
    # here so the kernel needs no scalar integer div/mod.
    t_idx = (traj[:, :, 2].astype(jnp.int32) - 1) % hours + 1
    traj_flat = jnp.stack(
        [traj[:, :, 0].astype(jnp.int32),
         traj[:, :, 1].astype(jnp.int32),
         t_idx], axis=-1).reshape(-1)                                  # (N*M*3,)

    ds2 = mat[:, :, :, 0].reshape(N * M, M).astype(jnp.float32)        # delta_s

    # mask[n,i,j] = (i < len_n) & (j < len_n)  ==  j < bound[n,i]
    lens = traj_len.astype(jnp.int32)[:, None]                         # (N, 1)
    i_idx = jnp.arange(M, dtype=jnp.int32)[None, :]                    # (1, M)
    row_bound = jnp.where(i_idx < lens, lens, 0).reshape(N * M, 1)

    col_j = (jnp.arange(M * E, dtype=jnp.int32) // E)[None, :]         # (1, M*E)
    sel = (jnp.arange(M, dtype=jnp.int32)[:, None] == col_j
           ).astype(jnp.float32)                                       # (M, M*E)
    tab = jnp.tile(jnp.concatenate([emb_sl, emb_su, emb_tl, emb_tu], axis=0),
                   (1, M)).astype(jnp.float32)                         # (8, M*E)

    kernel = functools.partial(_multi_embed_kernel, nb=nb, M=M, E=E,
                               su=su, sl=sl, tu=tu, tl=tl)

    joint2, delta2 = pl.pallas_call(
        kernel,
        out_shape=(jax.ShapeDtypeStruct((N * M, E), jnp.float32),
                   jax.ShapeDtypeStruct((N * M, M * E), jnp.float32)),
        grid_spec=pltpu.PrefetchScalarGridSpec(
            num_scalar_prefetch=1,
            grid=grid,
            in_specs=[
                pl.BlockSpec((rows, M), lambda b, t: (b, 0)),          # ds2
                pl.BlockSpec((rows, 1), lambda b, t: (b, 0)),          # row_bound
                pl.BlockSpec((1, M * E), lambda b, t: (0, 0)),         # col_j
                pl.BlockSpec((M, M * E), lambda b, t: (0, 0)),         # sel
                pl.BlockSpec((8, M * E), lambda b, t: (0, 0)),         # tab
                pl.BlockSpec(emb_t.shape, lambda b, t: (0, 0)),        # emb_t
                pl.BlockSpec(emb_l.shape, lambda b, t: (0, 0)),        # emb_l
                pl.BlockSpec(emb_u.shape, lambda b, t: (0, 0)),        # emb_u
            ],
            out_specs=(
                pl.BlockSpec((rows, E), lambda b, t: (b, 0)),          # joint
                pl.BlockSpec((rows, M * E), lambda b, t: (b, 0)),      # delta
            ),
        ),
        compiler_params=pltpu.CompilerParams(
            dimension_semantics=("parallel",)),
    )(traj_flat, ds2, row_bound, col_j, sel, tab,
      emb_t.astype(jnp.float32), emb_l.astype(jnp.float32),
      emb_u.astype(jnp.float32))

    return joint2.reshape(N, M, E), delta2.reshape(N, M, M, E)


def multi_embed_reference(traj, mat, traj_len, embed_tables, ex):
    """Pure-JAX reference mirroring the PyTorch code exactly."""
    emb_t, emb_l, emb_u, emb_su, emb_sl, emb_tu, emb_tl = embed_tables
    su, sl, tu, tl = ex
    N, M, _ = traj.shape
    t_idx = (traj[:, :, 2] - 1) % hours + 1
    joint = emb_t[t_idx] + emb_l[traj[:, :, 1]] + emb_u[traj[:, :, 0]]
    delta_s = mat[:, :, :, 0]
    i_idx = jnp.arange(M)[None, :, None]
    j_idx = jnp.arange(M)[None, None, :]
    lens = traj_len[:, None, None]
    mask = ((i_idx < lens) & (j_idx < lens)).astype(jnp.int32)
    esl, esu, etl, etu = emb_sl[mask], emb_su[mask], emb_tl[mask], emb_tu[mask]
    vsl = (delta_s - sl)[..., None]
    vsu = (su - delta_s)[..., None]
    vtl = (delta_s - tl)[..., None]
    vtu = (tu - delta_s)[..., None]
    space_interval = (esl * vsu + esu * vsl) / (su - sl)
    time_interval = (etl * vtu + etu * vtl) / (tu - tl)
    return joint, space_interval + time_interval


if __name__ == "__main__":
    N, M, E = 4, 8, 32
    n_user, n_loc = 12, 64
    ex = (100.0, 0.0, 48.0, 0.0)          # (su, sl, tu, tl)

    key = jax.random.PRNGKey(0)
    ks = jax.random.split(key, 11)
    traj = jnp.stack([
        jax.random.randint(ks[0], (N, M), 1, n_user),       # user id
        jax.random.randint(ks[1], (N, M), 1, n_loc),         # location id
        jax.random.randint(ks[2], (N, M), 1, 10 * hours),    # raw timestamp (hours)
    ], axis=-1).astype(jnp.int32)                            # (N, M, 3)
    mat = jax.random.uniform(ks[3], (N, M, M, 2), jnp.float32, 0.0, 90.0)
    traj_len = jnp.array([M, 5, 3, M], dtype=jnp.int32)

    embed_tables = (
        jax.random.normal(ks[4], (hours + 1, E), jnp.float32),   # emb_t
        jax.random.normal(ks[5], (n_loc, E), jnp.float32),       # emb_l
        jax.random.normal(ks[6], (n_user, E), jnp.float32),      # emb_u
        jax.random.normal(ks[7], (2, E), jnp.float32),           # emb_su
        jax.random.normal(ks[8], (2, E), jnp.float32),           # emb_sl
        jax.random.normal(ks[9], (2, E), jnp.float32),           # emb_tu
        jax.random.normal(ks[10], (2, E), jnp.float32),          # emb_tl
    )

    joint, delta = multi_embed_forward(traj, mat, traj_len, embed_tables, ex,
                                       batch_block=2)
    joint, delta = jax.block_until_ready((joint, delta))

    joint_ref, delta_ref = multi_embed_reference(traj, mat, traj_len,
                                                 embed_tables, ex)
    assert joint.shape == (N, M, E) and delta.shape == (N, M, M, E)
    assert jnp.allclose(joint, joint_ref, atol=1e-5, rtol=1e-5), \
        float(jnp.max(jnp.abs(joint - joint_ref)))
    assert jnp.allclose(delta, delta_ref, atol=1e-4, rtol=1e-4), \
        float(jnp.max(jnp.abs(delta - delta_ref)))
    print("KERNEL_OK")
</pallas_src>

<mosaic_0001>
module attributes {stable_mosaic.version = 11 : i64} {
  func.func @_multi_embed_kernel(%arg0: i32, %arg1: memref<96xi32, #tpu.memory_space<smem>>, %arg2: memref<16x8xf32, #tpu.memory_space<vmem>>, %arg3: memref<16x1xi32, #tpu.memory_space<vmem>>, %arg4: memref<1x256xi32, #tpu.memory_space<vmem>>, %arg5: memref<8x256xf32, #tpu.memory_space<vmem>>, %arg6: memref<8x256xf32, #tpu.memory_space<vmem>>, %arg7: memref<169x32xf32, #tpu.memory_space<vmem>>, %arg8: memref<64x32xf32, #tpu.memory_space<vmem>>, %arg9: memref<12x32xf32, #tpu.memory_space<vmem>>, %arg10: memref<16x32xf32, #tpu.memory_space<vmem>>, %arg11: memref<16x256xf32, #tpu.memory_space<vmem>>) attributes {dimension_semantics = [#tpu.dimension_semantics<parallel>], iteration_bounds = array<i64: 2>, scalar_prefetch = 1 : i64, scratch_operands = 0 : i64, tpu.core_type = #tpu.core_type<tc>, window_params = [{transform_indices = @transform_0, window_bounds = array<i64: 16, 8>}, {transform_indices = @transform_1, window_bounds = array<i64: 16, 1>}, {pipeline_mode = #tpu.pipeline_mode<synchronous>, transform_indices = @transform_2, window_bounds = array<i64: 1, 256>}, {pipeline_mode = #tpu.pipeline_mode<synchronous>, transform_indices = @transform_3, window_bounds = array<i64: 8, 256>}, {pipeline_mode = #tpu.pipeline_mode<synchronous>, transform_indices = @transform_4, window_bounds = array<i64: 8, 256>}, {pipeline_mode = #tpu.pipeline_mode<synchronous>, transform_indices = @transform_5, window_bounds = array<i64: 169, 32>}, {pipeline_mode = #tpu.pipeline_mode<synchronous>, transform_indices = @transform_6, window_bounds = array<i64: 64, 32>}, {pipeline_mode = #tpu.pipeline_mode<synchronous>, transform_indices = @transform_7, window_bounds = array<i64: 12, 32>}, {transform_indices = @transform_8, window_bounds = array<i64: 16, 32>}, {transform_indices = @transform_9, window_bounds = array<i64: 16, 256>}]} {
    %c16_i32 = arith.constant 16 : i32
    %0 = arith.muli %arg0, %c16_i32 : i32
    %c3_i32 = arith.constant 3 : i32
    %1 = arith.muli %0, %c3_i32 : i32
    %c0_i32 = arith.constant 0 : i32
    %c16_i32_0 = arith.constant 16 : i32
    %2 = arith.addi %c0_i32, %c16_i32_0 : i32
    %c1_i32 = arith.constant 1 : i32
    scf.for %arg12 = %c0_i32 to %2 step %c1_i32  : i32 {
      %c3_i32_19 = arith.constant 3 : i32
      %60 = arith.muli %arg12, %c3_i32_19 : i32
      %61 = arith.addi %1, %60 : i32
      %c0_i32_20 = arith.constant 0 : i32
      %62 = arith.addi %61, %c0_i32_20 : i32
      %63 = arith.index_cast %62 : i32 to index
      %64 = memref.load %arg1[%63] : memref<96xi32, #tpu.memory_space<smem>>
      %c1_i32_21 = arith.constant 1 : i32
      %65 = arith.addi %61, %c1_i32_21 : i32
      %66 = arith.index_cast %65 : i32 to index
      %67 = memref.load %arg1[%66] : memref<96xi32, #tpu.memory_space<smem>>
      %c2_i32 = arith.constant 2 : i32
      %68 = arith.addi %61, %c2_i32 : i32
      %69 = arith.index_cast %68 : i32 to index
      %70 = memref.load %arg1[%69] : memref<96xi32, #tpu.memory_space<smem>>
      %71 = arith.index_cast %70 : i32 to index
      %c0_22 = arith.constant 0 : index
      %72 = vector.load %arg7[%71, %c0_22] : memref<169x32xf32, #tpu.memory_space<vmem>>, vector<1x32xf32>
      %73 = arith.index_cast %67 : i32 to index
      %c0_23 = arith.constant 0 : index
      %74 = vector.load %arg8[%73, %c0_23] : memref<64x32xf32, #tpu.memory_space<vmem>>, vector<1x32xf32>
      %75 = arith.addf %72, %74 : vector<1x32xf32>
      %76 = arith.index_cast %64 : i32 to index
      %c0_24 = arith.constant 0 : index
      %77 = vector.load %arg9[%76, %c0_24] : memref<12x32xf32, #tpu.memory_space<vmem>>, vector<1x32xf32>
      %78 = arith.addf %75, %77 : vector<1x32xf32>
      %79 = arith.index_cast %arg12 : i32 to index
      %c0_25 = arith.constant 0 : index
      %80 = vector.load %arg10[%79, %c0_25] : memref<16x32xf32, #tpu.memory_space<vmem>>, vector<1x32xf32>
      tpu.vector_store %arg10[%79, %c0_25], %78 {strides = array<i32>} : memref<16x32xf32, #tpu.memory_space<vmem>>, vector<1x32xf32>,
    }
    %c16_i32_1 = arith.constant 16 : i32
    %c0 = arith.constant 0 : index
    %c0_2 = arith.constant 0 : index
    %3 = vector.load %arg2[%c0, %c0_2] : memref<16x8xf32, #tpu.memory_space<vmem>>, vector<16x8xf32>
    %c0_3 = arith.constant 0 : index
    %c0_4 = arith.constant 0 : index
    %4 = vector.load %arg5[%c0_3, %c0_4] : memref<8x256xf32, #tpu.memory_space<vmem>>, vector<8x256xf32>
    %cst = arith.constant dense<0.000000e+00> : vector<16x256xf32>
    %5 = tpu.matmul %3, %4, %cst {dimension_numbers = #tpu.dot_dimension_numbers<[1], [0], [0], [1], [0, 0, 1, 1], [], []>} : vector<16x8xf32>, vector<8x256xf32>, vector<16x256xf32> -> vector<16x256xf32>
    %c0_5 = arith.constant 0 : index
    %c0_6 = arith.constant 0 : index
    %6 = vector.load %arg4[%c0_5, %c0_6] : memref<1x256xi32, #tpu.memory_space<vmem>>, vector<1x256xi32>
    %c0_7 = arith.constant 0 : index
    %c0_8 = arith.constant 0 : index
    %7 = vector.load %arg3[%c0_7, %c0_8] : memref<16x1xi32, #tpu.memory_space<vmem>>, vector<16x1xi32>
    %8 = vector.broadcast %6 : vector<1x256xi32> to vector<16x256xi32>
    %9 = vector.broadcast %7 : vector<16x1xi32> to vector<16x256xi32>
    %10 = arith.cmpi slt, %8, %9 : vector<16x256xi32>
    %c0_9 = arith.constant 0 : index
    %c0_10 = arith.constant 0 : index
    %11 = vector.load %arg6[%c0_9, %c0_10] : memref<8x256xf32, #tpu.memory_space<vmem>>, vector<8x256xf32>
    %12 = vector.extract_strided_slice %11 {offsets = [1, 0], sizes = [1, 256], strides = [1, 1]} : vector<8x256xf32> to vector<1x256xf32>
    %13 = vector.extract_strided_slice %11 {offsets = [0, 0], sizes = [1, 256], strides = [1, 1]} : vector<8x256xf32> to vector<1x256xf32>
    %14 = vector.shape_cast %12 : vector<1x256xf32> to vector<1x256xf32>
    %15 = vector.broadcast %14 : vector<1x256xf32> to vector<16x256xf32>
    %16 = vector.shape_cast %13 : vector<1x256xf32> to vector<1x256xf32>
    %17 = vector.broadcast %16 : vector<1x256xf32> to vector<16x256xf32>
    %18 = arith.select %10, %15, %17 : vector<16x256xi1>, vector<16x256xf32>
    %19 = vector.extract_strided_slice %11 {offsets = [3, 0], sizes = [1, 256], strides = [1, 1]} : vector<8x256xf32> to vector<1x256xf32>
    %20 = vector.extract_strided_slice %11 {offsets = [2, 0], sizes = [1, 256], strides = [1, 1]} : vector<8x256xf32> to vector<1x256xf32>
    %21 = vector.shape_cast %19 : vector<1x256xf32> to vector<1x256xf32>
    %22 = vector.broadcast %21 : vector<1x256xf32> to vector<16x256xf32>
    %23 = vector.shape_cast %20 : vector<1x256xf32> to vector<1x256xf32>
    %24 = vector.broadcast %23 : vector<1x256xf32> to vector<16x256xf32>
    %25 = arith.select %10, %22, %24 : vector<16x256xi1>, vector<16x256xf32>
    %26 = vector.extract_strided_slice %11 {offsets = [5, 0], sizes = [1, 256], strides = [1, 1]} : vector<8x256xf32> to vector<1x256xf32>
    %27 = vector.extract_strided_slice %11 {offsets = [4, 0], sizes = [1, 256], strides = [1, 1]} : vector<8x256xf32> to vector<1x256xf32>
    %28 = vector.shape_cast %26 : vector<1x256xf32> to vector<1x256xf32>
    %29 = vector.broadcast %28 : vector<1x256xf32> to vector<16x256xf32>
    %30 = vector.shape_cast %27 : vector<1x256xf32> to vector<1x256xf32>
    %31 = vector.broadcast %30 : vector<1x256xf32> to vector<16x256xf32>
    %32 = arith.select %10, %29, %31 : vector<16x256xi1>, vector<16x256xf32>
    %33 = vector.extract_strided_slice %11 {offsets = [7, 0], sizes = [1, 256], strides = [1, 1]} : vector<8x256xf32> to vector<1x256xf32>
    %34 = vector.extract_strided_slice %11 {offsets = [6, 0], sizes = [1, 256], strides = [1, 1]} : vector<8x256xf32> to vector<1x256xf32>
    %35 = vector.shape_cast %33 : vector<1x256xf32> to vector<1x256xf32>
    %36 = vector.broadcast %35 : vector<1x256xf32> to vector<16x256xf32>
    %37 = vector.shape_cast %34 : vector<1x256xf32> to vector<1x256xf32>
    %38 = vector.broadcast %37 : vector<1x256xf32> to vector<16x256xf32>
    %39 = arith.select %10, %36, %38 : vector<16x256xi1>, vector<16x256xf32>
    %cst_11 = arith.constant 0.000000e+00 : f32
    %40 = vector.broadcast %cst_11 : f32 to vector<16x256xf32>
    %41 = arith.subf %5, %40 : vector<16x256xf32>
    %cst_12 = arith.constant 1.000000e+02 : f32
    %42 = vector.broadcast %cst_12 : f32 to vector<16x256xf32>
    %43 = arith.subf %42, %5 : vector<16x256xf32>
    %cst_13 = arith.constant 0.000000e+00 : f32
    %44 = vector.broadcast %cst_13 : f32 to vector<16x256xf32>
    %45 = arith.subf %5, %44 : vector<16x256xf32>
    %cst_14 = arith.constant 4.800000e+01 : f32
    %46 = vector.broadcast %cst_14 : f32 to vector<16x256xf32>
    %47 = arith.subf %46, %5 : vector<16x256xf32>
    %48 = arith.mulf %18, %43 : vector<16x256xf32>
    %49 = arith.mulf %25, %41 : vector<16x256xf32>
    %50 = arith.addf %48, %49 : vector<16x256xf32>
    %cst_15 = arith.constant 1.000000e+02 : f32
    %51 = vector.broadcast %cst_15 : f32 to vector<16x256xf32>
    %52 = arith.divf %50, %51 : vector<16x256xf32>
    %53 = arith.mulf %32, %47 : vector<16x256xf32>
    %54 = arith.mulf %39, %45 : vector<16x256xf32>
    %55 = arith.addf %53, %54 : vector<16x256xf32>
    %cst_16 = arith.constant 4.800000e+01 : f32
    %56 = vector.broadcast %cst_16 : f32 to vector<16x256xf32>
    %57 = arith.divf %55, %56 : vector<16x256xf32>
    %58 = arith.addf %52, %57 : vector<16x256xf32>
    %c0_17 = arith.constant 0 : index
    %c0_18 = arith.constant 0 : index
    %59 = vector.load %arg11[%c0_17, %c0_18] : memref<16x256xf32, #tpu.memory_space<vmem>>, vector<16x256xf32>
    tpu.vector_store %arg11[%c0_17, %c0_18], %58 {strides = array<i32>} : memref<16x256xf32, #tpu.memory_space<vmem>>, vector<16x256xf32>,
    return
  }
  func.func @transform_0(%arg0: i32, %arg1: memref<96xi32, #tpu.memory_space<smem>>) -> (i32, i32) {
    %c0_i32 = arith.constant 0 : i32
    %c0_i32_0 = arith.constant 0 : i32
    return %arg0, %c0_i32 : i32, i32
  }
  func.func @transform_1(%arg0: i32, %arg1: memref<96xi32, #tpu.memory_space<smem>>) -> (i32, i32) {
    %c0_i32 = arith.constant 0 : i32
    %c0_i32_0 = arith.constant 0 : i32
    return %arg0, %c0_i32 : i32, i32
  }
  func.func @transform_2(%arg0: i32, %arg1: memref<96xi32, #tpu.memory_space<smem>>) -> (i32, i32) {
    %c0_i32 = arith.constant 0 : i32
    %c0_i32_0 = arith.constant 0 : i32
    %c0_i32_1 = arith.constant 0 : i32
    return %c0_i32, %c0_i32_0 : i32, i32
  }
  func.func @transform_3(%arg0: i32, %arg1: memref<96xi32, #tpu.memory_space<smem>>) -> (i32, i32) {
    %c0_i32 = arith.constant 0 : i32
    %c0_i32_0 = arith.constant 0 : i32
    %c0_i32_1 = arith.constant 0 : i32
    return %c0_i32, %c0_i32_0 : i32, i32
  }
  func.func @transform_4(%arg0: i32, %arg1: memref<96xi32, #tpu.memory_space<smem>>) -> (i32, i32) {
    %c0_i32 = arith.constant 0 : i32
    %c0_i32_0 = arith.constant 0 : i32
    %c0_i32_1 = arith.constant 0 : i32
    return %c0_i32, %c0_i32_0 : i32, i32
  }
  func.func @transform_5(%arg0: i32, %arg1: memref<96xi32, #tpu.memory_space<smem>>) -> (i32, i32) {
    %c0_i32 = arith.constant 0 : i32
    %c0_i32_0 = arith.constant 0 : i32
    %c0_i32_1 = arith.constant 0 : i32
    return %c0_i32, %c0_i32_0 : i32, i32
  }
  func.func @transform_6(%arg0: i32, %arg1: memref<96xi32, #tpu.memory_space<smem>>) -> (i32, i32) {
    %c0_i32 = arith.constant 0 : i32
    %c0_i32_0 = arith.constant 0 : i32
    %c0_i32_1 = arith.constant 0 : i32
    return %c0_i32, %c0_i32_0 : i32, i32
  }
  func.func @transform_7(%arg0: i32, %arg1: memref<96xi32, #tpu.memory_space<smem>>) -> (i32, i32) {
    %c0_i32 = arith.constant 0 : i32
    %c0_i32_0 = arith.constant 0 : i32
    %c0_i32_1 = arith.constant 0 : i32
    return %c0_i32, %c0_i32_0 : i32, i32
  }
  func.func @transform_8(%arg0: i32, %arg1: memref<96xi32, #tpu.memory_space<smem>>) -> (i32, i32) {
    %c0_i32 = arith.constant 0 : i32
    %c0_i32_0 = arith.constant 0 : i32
    return %arg0, %c0_i32 : i32, i32
  }
  func.func @transform_9(%arg0: i32, %arg1: memref<96xi32, #tpu.memory_space<smem>>) -> (i32, i32) {
    %c0_i32 = arith.constant 0 : i32
    %c0_i32_0 = arith.constant 0 : i32
    return %arg0, %c0_i32 : i32, i32
  }
}

</mosaic_0001>

<llo_original>
// kernel: tpu_custom_call.1
$region0: #{tpu_custom_call.1}
  #allocation0 [shape = 'u32[]', space=smem, size = 0x4, offset = 0x4, fixed_abs, tag = 'smem constant byte address 0x4 - core index']
  #allocation1 [shape = 'u32[144,128]{1,0:T(1,128)}', space=vmem, size = 0x12000, scoped, tag = 'internal scratch']
  #allocation2 [shape = 's32[1]{0}', space=sflag, size = 0x4, scoped, tag = 'scoped memory for tpu_custom_call.1']
  #allocation3 [shape = 'u8[512]{0}', space=smem, size = 0x200, scoped, tag = 'prefetched SMEM operand 0']
  %s0 = inlined_call_operand.vmem [shape: s32[96], index: 0, kind: input, shape index: {}]
  %s1 = inlined_call_operand.vmem [shape: f32[32,8], index: 1, kind: input, shape index: {}]
  %s2 = inlined_call_operand.vmem [shape: s32[32,1], index: 2, kind: input, shape index: {}]
  %s3 = inlined_call_operand.vmem [shape: s32[1,256], index: 3, kind: input, shape index: {}]
  %s4 = inlined_call_operand.vmem [shape: f32[8,256], index: 4, kind: input, shape index: {}]
  %s5 = inlined_call_operand.vmem [shape: f32[8,256], index: 5, kind: input, shape index: {}]
  %s6 = inlined_call_operand.vmem [shape: f32[169,32], index: 6, kind: input, shape index: {}]
  %s7 = inlined_call_operand.vmem [shape: f32[64,32], index: 7, kind: input, shape index: {}]
  %s8 = inlined_call_operand.vmem [shape: f32[12,32], index: 8, kind: input, shape index: {}]
  %s9 = inlined_call_operand.hbm [shape: f32[32,32], index: 9, kind: output, shape index: {0}]
  %s10 = inlined_call_operand.hbm [shape: f32[32,256], index: 10, kind: output, shape index: {1}]
  %11 = xla_tuple %s9, %s10
  %s12 = sld [smem:[#allocation0]]
  $region80: #{tpu_custom_call.1} parent=0
    _
  %s14 = ssub.s32 1, %s12
  %s15 = scalar_select 0, %s14, %s12
  %s16 = sshll.u32 %s0, 4
  %s17 = int_to_ptr.vmem [resolvable:$true] %s16
  %19 = dma.vmem_to_smem %s17, 16, [#allocation3], [#allocation2]
  %20 = dma.done [#allocation2], 16
  %21 = sfence
  $region1: #{tpu_custom_call.1} parent=0
    #allocation4 [shape = 'u8[16384]{0}', space=vmem, size = 0x4000, scoped, tag = 'output window, operand 0']
    #allocation5 [shape = 's32[2]{0}', space=sflag, size = 0x8, scoped, tag = 'scoped memory for tpu_custom_call.1']
    #allocation6 [shape = 'u8[32768]{0}', space=vmem, size = 0x8000, scoped, tag = 'output window, operand 1']
    #allocation7 [shape = 's32[2]{0}', space=sflag, size = 0x8, scoped, tag = 'scoped memory for tpu_custom_call.1']
    %22 = vsyncpa [#allocation5], 0
    %s23 = scalar_lea.sflag [#allocation5], 1
    %24 = vsyncpa %s23, 0
    %25 = vsyncpa [#allocation7], 0
    %s26 = scalar_lea.sflag [#allocation7], 1
    %27 = vsyncpa %s26, 0
    loop: start=0, step=1, limit=4
    $region2: #{tpu_custom_call.1} parent=1 // loop_pre_header
      _
    $region3: #{tpu_custom_call.1} parent=1 // loop_header
      %s29 = sphi 0, %s33
      %p30 = scmp.ge.s32.totalorder %s29, 4
      %s39 = sphi 0, %s41
      %s42 = sphi 0, %s39
      %s43 = sphi 0, %s42
      %s59 = sphi 0, %s43
      %s65 = sphi 0, %s67
      %s68 = sphi 0, %s65
      %s69 = sphi 0, %s68
      %s85 = sphi 0, %s69
      %s89 = sphi 0, %s89
      %s91 = sphi 0, %s89
      %s92 = sphi 0, %s91
      %s106 = sphi 0, %s92
      %s110 = sphi 0, %s110
      %s112 = sphi 0, %s110
      %s113 = sphi 0, %s112
      %s127 = sphi 0, %s113
      %s131 = sphi 0, %s131
      %s133 = sphi 0, %s131
      %s134 = sphi 0, %s133
      %s148 = sphi 0, %s134
      %s152 = sphi 0, %s152
      %s154 = sphi 0, %s152
      %s155 = sphi 0, %s154
      %s169 = sphi 0, %s155
      %s173 = sphi 0, %s173
      %s175 = sphi 0, %s173
      %s176 = sphi 0, %s175
      %s190 = sphi 0, %s176
      %s194 = sphi 0, %s194
      %s196 = sphi 0, %s194
      %s197 = sphi 0, %s196
      %s211 = sphi 0, %s197
      %s217 = sphi 0, %s219
      %s220 = sphi 0, %s217
      %s221 = sphi 0, %s220
      %s237 = sphi 0, %s221
      %s243 = sphi 0, %s245
      %s246 = sphi 0, %s243
      %s247 = sphi 0, %s246
      %s263 = sphi 0, %s247
    $region4: #{tpu_custom_call.1} parent=1 // loop_header_branch
      %32 = sbr.rel (%p30) target = $region8
    $region5: #{tpu_custom_call.1} parent=1 // loop_body
      %s34 = ssub.s32 %s29, 1
      %s35 = ssub.s32 %s29, 2
      %s36 = sadd.s32 %s29, 1
      %s37 = ssub.s32 %s29, %s36
      %p38 = scmp.eq.s32.totalorder %s37, 0
      %s40 = sadd.s32 %s39, 1
      %s41 = scalar_select %p38, %s39, %s40
      %p44 = pneg %p38
      %p45 = scmp.eq.s32.totalorder %s29, 1
      %p46 = por %p44, %p45
      %p47 = scmp.ne.s32.totalorder %s39, %s42
      %p48 = scmp.eq.s32.totalorder %s29, 0
      %p49 = por %p47, %p48
      %p50 = scmp.ne.s32.totalorder %s39, %s42
      %p51 = scmp.eq.s32.totalorder %s34, 1
      %p52 = por %p50, %p51
      %p53 = scmp.ne.s32.totalorder %s42, %s43
      %p54 = scmp.eq.s32.totalorder %s34, 0
      %p55 = por %p53, %p54
      %p56 = scmp.ne.s32.totalorder %s42, %s43
      %p57 = scmp.eq.s32.totalorder %s35, 1
      %p58 = por %p56, %p57
      %p60 = scmp.ne.s32.totalorder %s43, %s59
      %p61 = scmp.eq.s32.totalorder %s35, 0
      %p62 = por %p60, %p61
      %s63 = ssub.s32 %s29, %s36
      %p64 = scmp.eq.s32.totalorder %s63, 0
      %s66 = sadd.s32 %s65, 1
      %s67 = scalar_select %p64, %s65, %s66
      %p70 = pneg %p64
      %p71 = scmp.eq.s32.totalorder %s29, 1
      %p72 = por %p70, %p71
      %p73 = scmp.ne.s32.totalorder %s65, %s68
      %p74 = scmp.eq.s32.totalorder %s29, 0
      %p75 = por %p73, %p74
      %p76 = scmp.ne.s32.totalorder %s65, %s68
      %p77 = scmp.eq.s32.totalorder %s34, 1
      %p78 = por %p76, %p77
      %p79 = scmp.ne.s32.totalorder %s68, %s69
      %p80 = scmp.eq.s32.totalorder %s34, 0
      %p81 = por %p79, %p80
      %p82 = scmp.ne.s32.totalorder %s68, %s69
      %p83 = scmp.eq.s32.totalorder %s35, 1
      %p84 = por %p82, %p83
      %p86 = scmp.ne.s32.totalorder %s69, %s85
      %p87 = scmp.eq.s32.totalorder %s35, 0
      %p88 = por %p86, %p87
      %s90 = sadd.s32 %s89, 1
      %p93 = scmp.eq.s32.totalorder %s29, 1
      %p94 = scmp.ne.s32.totalorder %s89, %s91
      %p95 = scmp.eq.s32.totalorder %s29, 0
      %p96 = por %p94, %p95
      %p97 = scmp.ne.s32.totalorder %s89, %s91
      %p98 = scmp.eq.s32.totalorder %s34, 1
      %p99 = por %p97, %p98
      %p100 = scmp.ne.s32.totalorder %s91, %s92
      %p101 = scmp.eq.s32.totalorder %s34, 0
      %p102 = por %p100, %p101
      %p103 = scmp.ne.s32.totalorder %s91, %s92
      %p104 = scmp.eq.s32.totalorder %s35, 1
      %p105 = por %p103, %p104
      %p107 = scmp.ne.s32.totalorder %s92, %s106
      %p108 = scmp.eq.s32.totalorder %s35, 0
      %p109 = por %p107, %p108
      %s111 = sadd.s32 %s110, 1
      %p114 = scmp.eq.s32.totalorder %s29, 1
      %p115 = scmp.ne.s32.totalorder %s110, %s112
      %p116 = scmp.eq.s32.totalorder %s29, 0
      %p117 = por %p115, %p116
      %p118 = scmp.ne.s32.totalorder %s110, %s112
      %p119 = scmp.eq.s32.totalorder %s34, 1
      %p120 = por %p118, %p119
      %p121 = scmp.ne.s32.totalorder %s112, %s113
      %p122 = scmp.eq.s32.totalorder %s34, 0
      %p123 = por %p121, %p122
      %p124 = scmp.ne.s32.totalorder %s112, %s113
      %p125 = scmp.eq.s32.totalorder %s35, 1
      %p126 = por %p124, %p125
      %p128 = scmp.ne.s32.totalorder %s113, %s127
      %p129 = scmp.eq.s32.totalorder %s35, 0
      %p130 = por %p128, %p129
      %s132 = sadd.s32 %s131, 1
      %p135 = scmp.eq.s32.totalorder %s29, 1
      %p136 = scmp.ne.s32.totalorder %s131, %s133
      %p137 = scmp.eq.s32.totalorder %s29, 0
      %p138 = por %p136, %p137
      %p139 = scmp.ne.s32.totalorder %s131, %s133
      %p140 = scmp.eq.s32.totalorder %s34, 1
      %p141 = por %p139, %p140
      %p142 = scmp.ne.s32.totalorder %s133, %s134
      %p143 = scmp.eq.s32.totalorder %s34, 0
      %p144 = por %p142, %p143
      %p145 = scmp.ne.s32.totalorder %s133, %s134
      %p146 = scmp.eq.s32.totalorder %s35, 1
      %p147 = por %p145, %p146
      %p149 = scmp.ne.s32.totalorder %s134, %s148
      %p150 = scmp.eq.s32.totalorder %s35, 0
      %p151 = por %p149, %p150
      %s153 = sadd.s32 %s152, 1
      %p156 = scmp.eq.s32.totalorder %s29, 1
      %p157 = scmp.ne.s32.totalorder %s152, %s154
      %p158 = scmp.eq.s32.totalorder %s29, 0
      %p159 = por %p157, %p158
      %p160 = scmp.ne.s32.totalorder %s152, %s154
      %p161 = scmp.eq.s32.totalorder %s34, 1
      %p162 = por %p160, %p161
      %p163 = scmp.ne.s32.totalorder %s154, %s155
      %p164 = scmp.eq.s32.totalorder %s34, 0
      %p165 = por %p163, %p164
      %p166 = scmp.ne.s32.totalorder %s154, %s155
      %p167 = scmp.eq.s32.totalorder %s35, 1
      %p168 = por %p166, %p167
      %p170 = scmp.ne.s32.totalorder %s155, %s169
      %p171 = scmp.eq.s32.totalorder %s35, 0
      %p172 = por %p170, %p171
      %s174 = sadd.s32 %s173, 1
      %p177 = scmp.eq.s32.totalorder %s29, 1
      %p178 = scmp.ne.s32.totalorder %s173, %s175
      %p179 = scmp.eq.s32.totalorder %s29, 0
      %p180 = por %p178, %p179
      %p181 = scmp.ne.s32.totalorder %s173, %s175
      %p182 = scmp.eq.s32.totalorder %s34, 1
      %p183 = por %p181, %p182
      %p184 = scmp.ne.s32.totalorder %s175, %s176
      %p185 = scmp.eq.s32.totalorder %s34, 0
      %p186 = por %p184, %p185
      %p187 = scmp.ne.s32.totalorder %s175, %s176
      %p188 = scmp.eq.s32.totalorder %s35, 1
      %p189 = por %p187, %p188
      %p191 = scmp.ne.s32.totalorder %s176, %s190
      %p192 = scmp.eq.s32.totalorder %s35, 0
      %p193 = por %p191, %p192
      %s195 = sadd.s32 %s194, 1
      %p198 = scmp.eq.s32.totalorder %s29, 1
      %p199 = scmp.ne.s32.totalorder %s194, %s196
      %p200 = scmp.eq.s32.totalorder %s29, 0
      %p201 = por %p199, %p200
      %p202 = scmp.ne.s32.totalorder %s194, %s196
      %p203 = scmp.eq.s32.totalorder %s34, 1
      %p204 = por %p202, %p203
      %p205 = scmp.ne.s32.totalorder %s196, %s197
      %p206 = scmp.eq.s32.totalorder %s34, 0
      %p207 = por %p205, %p206
      %p208 = scmp.ne.s32.totalorder %s196, %s197
      %p209 = scmp.eq.s32.totalorder %s35, 1
      %p210 = por %p208, %p209
      %p212 = scmp.ne.s32.totalorder %s197, %s211
      %p213 = scmp.eq.s32.totalorder %s35, 0
      %p214 = por %p212, %p213
      %s215 = ssub.s32 %s29, %s36
      %p216 = scmp.eq.s32.totalorder %s215, 0
      %s218 = sadd.s32 %s217, 1
      %s219 = scalar_select %p216, %s217, %s218
      %p222 = pneg %p216
      %p223 = scmp.eq.s32.totalorder %s29, 1
      %p224 = por %p222, %p223
      %p225 = scmp.ne.s32.totalorder %s217, %s220
      %p226 = scmp.eq.s32.totalorder %s29, 0
      %p227 = por %p225, %p226
      %p228 = scmp.ne.s32.totalorder %s217, %s220
      %p229 = scmp.eq.s32.totalorder %s34, 1
      %p230 = por %p228, %p229
      %p231 = scmp.ne.s32.totalorder %s220, %s221
      %p232 = scmp.eq.s32.totalorder %s34, 0
      %p233 = por %p231, %p232
      %p234 = scmp.ne.s32.totalorder %s220, %s221
      %p235 = scmp.eq.s32.totalorder %s35, 1
      %p236 = por %p234, %p235
      %p238 = scmp.ne.s32.totalorder %s221, %s237
      %p239 = scmp.eq.s32.totalorder %s35, 0
      %p240 = por %p238, %p239
      %s241 = ssub.s32 %s29, %s36
      %p242 = scmp.eq.s32.totalorder %s241, 0
      %s244 = sadd.s32 %s243, 1
      %s245 = scalar_select %p242, %s243, %s244
      %p248 = pneg %p242
      %p249 = scmp.eq.s32.totalorder %s29, 1
      %p250 = por %p248, %p249
      %p251 = scmp.ne.s32.totalorder %s243, %s246
      %p252 = scmp.eq.s32.totalorder %s29, 0
      %p253 = por %p251, %p252
      %p254 = scmp.ne.s32.totalorder %s243, %s246
      %p255 = scmp.eq.s32.totalorder %s34, 1
      %p256 = por %p254, %p255
      %p257 = scmp.ne.s32.totalorder %s246, %s247
      %p258 = scmp.eq.s32.totalorder %s34, 0
      %p259 = por %p257, %p258
      %p260 = scmp.ne.s32.totalorder %s246, %s247
      %p261 = scmp.eq.s32.totalorder %s35, 1
      %p262 = por %p260, %p261
      %p264 = scmp.ne.s32.totalorder %s247, %s263
      %p265 = scmp.eq.s32.totalorder %s35, 0
      %p266 = por %p264, %p265
      %p267 = scmp.le.s32.totalorder 1, %s29
      %p268 = scmp.lt.s32.totalorder %s29, 3
      %p269 = pnand %p267, %p268
      %p270 = pneg %p269
      // Predicated region
      $region9: #{tpu_custom_call.1} parent=5 // pred_check
        _
      $region10: #{tpu_custom_call.1} parent=5 // pred_check_branch
        %272 = sbr.rel (%p269) target = $region12
      $region11: #{tpu_custom_call.1} parent=5 // pred_region
        %s273 = ssub.s32 %s29, 1
        // Predicated region
        $region13: #{tpu_custom_call.1} parent=11 // pred_check
          %p274 = pneg %p102
        $region14: #{tpu_custom_call.1} parent=11 // pred_check_branch
          %276 = sbr.rel (%p274) target = $region16
        $region15: #{tpu_custom_call.1} parent=11 // pred_region
          _
        $region16: #{tpu_custom_call.1} parent=11 // pred_fallthru
          _
        // Predicated region
        $region17: #{tpu_custom_call.1} parent=11 // pred_check
          %p277 = pneg %p123
        $region18: #{tpu_custom_call.1} parent=11 // pred_check_branch
          %279 = sbr.rel (%p277) target = $region20
        $region19: #{tpu_custom_call.1} parent=11 // pred_region
          _
        $region20: #{tpu_custom_call.1} parent=11 // pred_fallthru
          _
        // Predicated region
        $region21: #{tpu_custom_call.1} parent=11 // pred_check
          %p280 = pneg %p144
        $region22: #{tpu_custom_call.1} parent=11 // pred_check_branch
          %282 = sbr.rel (%p280) target = $region24
        $region23: #{tpu_custom_call.1} parent=11 // pred_region
          _
        $region24: #{tpu_custom_call.1} parent=11 // pred_fallthru
          _
        // Predicated region
        $region25: #{tpu_custom_call.1} parent=11 // pred_check
          %p283 = pneg %p165
        $region26: #{tpu_custom_call.1} parent=11 // pred_check_branch
          %285 = sbr.rel (%p283) target = $region28
        $region27: #{tpu_custom_call.1} parent=11 // pred_region
          _
        $region28: #{tpu_custom_call.1} parent=11 // pred_fallthru
          _
        // Predicated region
        $region29: #{tpu_custom_call.1} parent=11 // pred_check
          %p286 = pneg %p186
        $region30: #{tpu_custom_call.1} parent=11 // pred_check_branch
          %288 = sbr.rel (%p286) target = $region32
        $region31: #{tpu_custom_call.1} parent=11 // pred_region
          _
        $region32: #{tpu_custom_call.1} parent=11 // pred_fallthru
          _
        // Predicated region
        $region33: #{tpu_custom_call.1} parent=11 // pred_check
          %p289 = pneg %p207
        $region34: #{tpu_custom_call.1} parent=11 // pred_check_branch
          %291 = sbr.rel (%p289) target = $region36
        $region35: #{tpu_custom_call.1} parent=11 // pred_region
          _
        $region36: #{tpu_custom_call.1} parent=11 // pred_fallthru
          _
      $region12: #{tpu_custom_call.1} parent=5 // pred_fallthru
        _
      %p292 = scmp.lt.s32.totalorder %s29, 2
      // Predicated region
      $region37: #{tpu_custom_call.1} parent=5 // pred_check
        %p293 = pneg %p292
      $region38: #{tpu_custom_call.1} parent=5 // pred_check_branch
        %295 = sbr.rel (%p293) target = $region40
      $region39: #{tpu_custom_call.1} parent=5 // pred_region
        // Predicated region
        $region41: #{tpu_custom_call.1} parent=39 // pred_check
          %p296 = pneg %p49
        $region42: #{tpu_custom_call.1} parent=39 // pred_check_branch
          %298 = sbr.rel (%p296) target = $region44
        $region43: #{tpu_custom_call.1} parent=39 // pred_region
          %s299 = smul.u32 2, %s29
          %p300 = scmp.lt.s32.totalorder %s299, 3
          %s301 = scalar_select %p300, %s299, 3
          %s302 = smul.addr %s301, 8
          %s303 = scalar_lea.vmem %s1, %s302
          %s304 = smul.u32 2, %s29
        $region44: #{tpu_custom_call.1} parent=39 // pred_fallthru
          _
        // Predicated region
        $region45: #{tpu_custom_call.1} parent=39 // pred_check
          %p305 = pneg %p75
        $region46: #{tpu_custom_call.1} parent=39 // pred_check_branch
          %307 = sbr.rel (%p305) target = $region48
        $region47: #{tpu_custom_call.1} parent=39 // pred_region
          %s308 = smul.u32 2, %s29
          %p309 = scmp.lt.s32.totalorder %s308, 3
          %s310 = scalar_select %p309, %s308, 3
          %s311 = smul.addr %s310, 8
          %s312 = scalar_lea.vmem %s2, %s311
          %s313 = smul.u32 2, %s29
        $region48: #{tpu_custom_call.1} parent=39 // pred_fallthru
          _
      $region40: #{tpu_custom_call.1} parent=5 // pred_fallthru
        _
      %p314 = scmp.le.s32.totalorder 1, %s29
      %p315 = scmp.lt.s32.totalorder %s29, 3
      %p316 = pnand %p314, %p315
      %p317 = pneg %p316
      // Predicated region
      $region49: #{tpu_custom_call.1} parent=5 // pred_check
        _
      $region50: #{tpu_custom_call.1} parent=5 // pred_check_branch
        %319 = sbr.rel (%p316) target = $region52
      $region51: #{tpu_custom_call.1} parent=5 // pred_region
        %s320 = ssub.s32 %s29, 1
        %s321 = smul.u32 2, %s34
        %p322 = scmp.lt.s32.totalorder %s321, 3
        %s323 = scalar_select %p322, %s321, 3
        %s324 = smul.addr %s323, 8
        %s325 = scalar_lea.vmem %s1, %s324
        %p326 = pneg %p55
        %p327 = pneg %p52
        %s328 = smul.u32 2, %s34
        %p329 = scmp.lt.s32.totalorder %s328, 3
        %s330 = scalar_select %p329, %s328, 3
        %s331 = smul.addr %s330, 8
        %s332 = scalar_lea.vmem %s2, %s331
        %p333 = pneg %p81
        %p334 = pneg %p78
        %p335 = pneg %p102
        %p336 = pneg %p99
        %p337 = pneg %p123
        %p338 = pneg %p120
        %p339 = pneg %p144
        %p340 = pneg %p141
        %p341 = pneg %p165
        %p342 = pneg %p162
        %p343 = pneg %p186
        %p344 = pneg %p183
        %p345 = pneg %p207
        %p346 = pneg %p204
        %p347 = pneg %p233
        %p348 = pneg %p230
        %s349 = sand.u32 %s220, 1
        %s350 = scalar_lea.sflag [#allocation5], %s349
        %s351 = sand.u32 %s220, 1
        %s352 = smul.addr %s351, 16
        %s353 = scalar_lea.vmem [#allocation4], %s352
        %p354 = pneg %p259
        %p355 = pneg %p256
        %s356 = sand.u32 %s246, 1
        %s357 = scalar_lea.sflag [#allocation7], %s356
        %s358 = sand.u32 %s246, 1
        %s359 = smul.addr %s358, 32
        %s360 = scalar_lea.vmem [#allocation6], %s359
        %s361 = smul.u32 2, %s34
        %p362 = scmp.lt.s32.totalorder %s361, 3
        %s363 = scalar_select %p362, %s361, 3
        %s364 = smul.addr %s363, 8
        %s365 = scalar_lea.vmem %s1, %s364
        %s366 = smul.u32 2, %s34
        %s367 = smul.u32 2, %s34
        %p368 = scmp.lt.s32.totalorder %s367, 3
        %s369 = scalar_select %p368, %s367, 3
        %s370 = smul.addr %s369, 8
        %s371 = scalar_lea.vmem %s2, %s370
        %s372 = smul.u32 2, %s34
        %s373 = smul.u32 2, %s34
        %s374 = smul.u32 2, %s34
        %s375 = smul.u32 %s34, 48
        loop: start=0, step=1, limit=16
        $region53: #{tpu_custom_call.1} parent=51 // loop_pre_header
          _
        $region54: #{tpu_custom_call.1} parent=51 // loop_header
          %s377 = sphi 0, %s381
          %p378 = scmp.ge.s32.totalorder %s377, 16
        $region55: #{tpu_custom_call.1} parent=51 // loop_header_branch
          %380 = sbr.rel (%p378) target = $region59
        $region56: #{tpu_custom_call.1} parent=51 // loop_body
          %s382 = smul.u32 %s377, 3
          %s383 = sadd.s32 %s375, %s382
          %s384 = sld [smem:[#allocation3 + %s383]]
          %s385 = sadd.s32 %s383, 1
          %s386 = sld [smem:[#allocation3 + %s385]]
          %s387 = sadd.s32 %s383, 2
          %s388 = sld [smem:[#allocation3 + %s387]]
          %s389 = scalar_lea.vmem %s6, %s388
          %v390 = vld [vmem:[%s389] sm:$0x1]
          %s391 = scalar_lea.vmem %s7, %s386
          %v392 = vld [vmem:[%s391] sm:$0x1]
          %v393 = vadd.f32 %v390, %v392
          %s394 = scalar_lea.vmem %s8, %s384
          %v395 = vld [vmem:[%s394] sm:$0x1]
          %v396 = vadd.f32 %v393, %v395
          %s397 = scalar_lea.vmem %s353, %s377 [#allocation4]
          %vm398 = vcmask 253952
          %399 = vst.msk [vmem:[%s397] sm:$0x1] %vm398, %v396
        $region57: #{tpu_custom_call.1} parent=51 // loop_footer
          %s381 = sadd.s32 1, %s377
        $region58: #{tpu_custom_call.1} parent=51 // loop_footer_branch
          %376 = sbr.rel target = $region54
        $region59: #{tpu_custom_call.1} parent=51 // loop_exit
          _
        %v400 = vld [vmem:[%s365] sm:$0xff]
        %v401 = vld [vmem:[%s365 + $0x8] sm:$0xff]
        %v402 = vld [vmem:[%s4] sm:$0xff]
        %v403 = vld [vmem:[%s4 + $0x8] sm:$0xff]
        %vm404 = vcmask 64512
        %v406 = vsel %vm404, %v400, 0
        %v409 = vsel %vm404, %v401, 0
        %411 = vmatprep.subr.mxu0 %v403
        %412 = vmatpush1.msra.mxu0 %v402
        %413 = vmatprep.subr.mxu0 0.0
        %414 = vmatpush1.msra.mxu0 0.0
        %415 = vmatprep.subr.mxu0 0.0
        %416 = vmatpush1.msra.mxu0 0.0
        %417 = vmatprep.subr.mxu0 0.0
        %418 = vmatpush1.msra.mxu0 0.0
        %419 = vmatprep.subr.mxu0 0.0
        %420 = vmatpush1.msra.mxu0 0.0
        %421 = vmatprep.subr.mxu0 0.0
        %422 = vmatpush1.msra.mxu0 0.0
        %423 = vmatprep.subr.mxu0 0.0
        %424 = vmatpush1.msra.mxu0 0.0
        %425 = vmatprep.subr.mxu0 0.0
        %426 = vmatpush1.msra.mxu0 0.0
        %427 = vmatprep.subr.mxu0 0.0
        %428 = vmatpush1.msra.mxu0 0.0
        %429 = vmatprep.subr.mxu0 0.0
        %430 = vmatpush1.msra.mxu0 0.0
        %431 = vmatprep.subr.mxu0 0.0
        %432 = vmatpush1.msra.mxu0 0.0
        %433 = vmatprep.subr.mxu0 0.0
        %434 = vmatpush1.msra.mxu0 0.0
        %435 = vmatprep.subr.mxu0 0.0
        %436 = vmatpush1.msra.mxu0 0.0
        %437 = vmatprep.subr.mxu0 0.0
        %438 = vmatpush1.msra.mxu0 0.0
        %439 = vmatprep.subr.mxu0 0.0
        %440 = vmatpush1.msra.mxu0 0.0
        %441 = vmatprep.subr.mxu0 0.0
        %442 = vmatpush1.msra.mxu0 0.0
        %443 = vmatprep.subr.mxu0 0.0
        %444 = vmatpush1.msra.mxu0 0.0
        %445 = vmatprep.subr.mxu0 0.0
        %446 = vmatpush1.msra.mxu0 0.0
        %447 = vmatprep.subr.mxu0 0.0
        %448 = vmatpush1.msra.mxu0 0.0
        %449 = vmatprep.subr.mxu0 0.0
        %450 = vmatpush1.msra.mxu0 0.0
        %451 = vmatprep.subr.mxu0 0.0
        %452 = vmatpush1.msra.mxu0 0.0
        %453 = vmatprep.subr.mxu0 0.0
        %454 = vmatpush1.msra.mxu0 0.0
        %455 = vmatprep.subr.mxu0 0.0
        %456 = vmatpush1.msra.mxu0 0.0
        %457 = vmatprep.subr.mxu0 0.0
        %458 = vmatpush1.msra.mxu0 0.0
        %459 = vmatprep.subr.mxu0 0.0
        %460 = vmatpush1.msra.mxu0 0.0
        %461 = vmatprep.subr.mxu0 0.0
        %462 = vmatpush1.msra.mxu0 0.0
        %463 = vmatprep.subr.mxu0 0.0
        %464 = vmatpush1.msra.mxu0 0.0
        %465 = vmatprep.subr.mxu0 0.0
        %466 = vmatpush1.msra.mxu0 0.0
        %467 = vmatprep.subr.mxu0 0.0
        %468 = vmatpush1.msra.mxu0 0.0
        %469 = vmatprep.subr.mxu0 0.0
        %470 = vmatpush1.msra.mxu0 0.0
        %471 = vmatprep.subr.mxu0 0.0
        %472 = vmatpush1.msra.mxu0 0.0
        %473 = vmatprep.subr.mxu0 0.0
        %474 = vmatpush1.msra.mxu0 0.0
        %475 = vmatprep.mubr.f32.mxu0 0.0
        %476 = vmatmul.mubr.f32.gmra.mrb[0].mxu0 %v406
        %v477 = vpop.f32.mrb[0].mxu0
        %v478 = vadd.f32 0.0, %v477
        %v479 = vpop.f32.mrb[0].mxu0
        %v480 = vadd.f32 0.0, %v479
        %481 = vmatprep.mubr.f32.mxu0 0.0
        %482 = vmatmul.mubr.f32.gmra.mrb[0].mxu0 %v409
        %v483 = vpop.f32.mrb[0].mxu0
        %v484 = vadd.f32 0.0, %v483
        %v485 = vpop.f32.mrb[0].mxu0
        %v486 = vadd.f32 0.0, %v485
        %487 = vdwg.mxu0
        %v488 = vld [vmem:[%s3] sm:$0x3]
        %v489 = vld [vmem:[%s371] sm:$0xff]
        %v490 = vld [vmem:[%s371 + $0x8] sm:$0xff]
        %v491 = vlaneseq
        %v492 = vshrl.u32 %v491, 7
        %v493 = vsub.s32 0, %v492
        %v494 = vrot.slane %v488, %v493
        %v495 = vlaneseq
        %v496 = vshrl.u32 %v495, 7
        %v497 = vsub.s32 1, %v496
        %v498 = vrot.slane %v488, %v497
        %499 = vset.pattern.permute.xlu0 0
        %500 = vperm.xlu0 %499, %v489
        %v501 = vpop.permute.xlu0 %500
        %502 = vset.pattern.permute.xlu0 0
        %503 = vperm.xlu0 %502, %v490
        %v504 = vpop.permute.xlu0 %503
        %vm505 = vcmp.lt.s32.totalorder %v494, %v501
        %vm506 = vcmp.lt.s32.totalorder %v498, %v501
        %vm507 = vcmp.lt.s32.totalorder %v494, %v504
        %vm508 = vcmp.lt.s32.totalorder %v498, %v504
        %v509 = vld [vmem:[%s5] sm:$0xff]
        %v510 = vld [vmem:[%s5 + $0x8] sm:$0xff]
        %v511 = vlaneseq
        %v512 = vshrl.u32 %v511, 7
        %v513 = vsub.s32 1, %v512
        %v514 = vrot.slane %v509, %v513
        %v515 = vlaneseq
        %v516 = vshrl.u32 %v515, 7
        %v517 = vsub.s32 1, %v516
        %v518 = vrot.slane %v510, %v517
        %v519 = vlaneseq
        %v520 = vshrl.u32 %v519, 7
        %v521 = vsub.s32 0, %v520
        %v522 = vrot.slane %v509, %v521
        %v523 = vlaneseq
        %v524 = vshrl.u32 %v523, 7
        %v525 = vsub.s32 0, %v524
        %v526 = vrot.slane %v510, %v525
        %v527 = vsel %vm505, %v514, %v522
        %v528 = vsel %vm506, %v518, %v526
        %v529 = vsel %vm507, %v514, %v522
        %v530 = vsel %vm508, %v518, %v526
        %v531 = vlaneseq
        %v532 = vshrl.u32 %v531, 7
        %v533 = vsub.s32 3, %v532
        %v534 = vrot.slane %v509, %v533
        %v535 = vlaneseq
        %v536 = vshrl.u32 %v535, 7
        %v537 = vsub.s32 3, %v536
        %v538 = vrot.slane %v510, %v537
        %v539 = vlaneseq
        %v540 = vshrl.u32 %v539, 7
        %v541 = vsub.s32 2, %v540
        %v542 = vrot.slane %v509, %v541
        %v543 = vlaneseq
        %v544 = vshrl.u32 %v543, 7
        %v545 = vsub.s32 2, %v544
        %v546 = vrot.slane %v510, %v545
        %v547 = vsel %vm505, %v534, %v542
        %v548 = vsel %vm506, %v538, %v546
        %v549 = vsel %vm507, %v534, %v542
        %v550 = vsel %vm508, %v538, %v546
        %v551 = vlaneseq
        %v552 = vshrl.u32 %v551, 7
        %v553 = vsub.s32 5, %v552
        %v554 = vrot.slane %v509, %v553
        %v555 = vlaneseq
        %v556 = vshrl.u32 %v555, 7
        %v557 = vsub.s32 5, %v556
        %v558 = vrot.slane %v510, %v557
        %v559 = vlaneseq
        %v560 = vshrl.u32 %v559, 7
        %v561 = vsub.s32 4, %v560
        %v562 = vrot.slane %v509, %v561
        %v563 = vlaneseq
        %v564 = vshrl.u32 %v563, 7
        %v565 = vsub.s32 4, %v564
        %v566 = vrot.slane %v510, %v565
        %v567 = vsel %vm505, %v554, %v562
        %v568 = vsel %vm506, %v558, %v566
        %v569 = vsel %vm507, %v554, %v562
        %v570 = vsel %vm508, %v558, %v566
        %v571 = vlaneseq
        %v572 = vshrl.u32 %v571, 7
        %v573 = vsub.s32 7, %v572
        %v574 = vrot.slane %v509, %v573
        %v575 = vlaneseq
        %v576 = vshrl.u32 %v575, 7
        %v577 = vsub.s32 7, %v576
        %v578 = vrot.slane %v510, %v577
        %v579 = vlaneseq
        %v580 = vshrl.u32 %v579, 7
        %v581 = vsub.s32 6, %v580
        %v582 = vrot.slane %v509, %v581
        %v583 = vlaneseq
        %v584 = vshrl.u32 %v583, 7
        %v585 = vsub.s32 6, %v584
        %v586 = vrot.slane %v510, %v585
        %v587 = vsel %vm505, %v574, %v582
        %v588 = vsel %vm506, %v578, %v586
        %v589 = vsel %vm507, %v574, %v582
        %v590 = vsel %vm508, %v578, %v586
        %v591 = vsub.f32 100.0, %v478
        %v592 = vsub.f32 100.0, %v480
        %v593 = vsub.f32 100.0, %v484
        %v594 = vsub.f32 100.0, %v486
        %v595 = vsub.f32 48.0, %v478
        %v596 = vsub.f32 48.0, %v480
        %v597 = vsub.f32 48.0, %v484
        %v598 = vsub.f32 48.0, %v486
        %v599 = vmul.f32 %v527, %v591
        %v600 = vmul.f32 %v528, %v592
        %v601 = vmul.f32 %v529, %v593
        %v602 = vmul.f32 %v530, %v594
        %v603 = vmul.f32 %v547, %v478
        %v604 = vmul.f32 %v548, %v480
        %v605 = vmul.f32 %v549, %v484
        %v606 = vmul.f32 %v550, %v486
        %v607 = vadd.f32 %v599, %v603
        %v608 = vadd.f32 %v600, %v604
        %v609 = vadd.f32 %v601, %v605
        %v610 = vadd.f32 %v602, %v606
        %v611 = vrcp.pop 100.0
        %v612 = vmul.f32 %v607, %v611
        %v613 = vmul.f32 %v608, %v611
        %v614 = vmul.f32 %v609, %v611
        %v615 = vmul.f32 %v610, %v611
        %v616 = vmul.f32 %v567, %v595
        %v617 = vmul.f32 %v568, %v596
        %v618 = vmul.f32 %v569, %v597
        %v619 = vmul.f32 %v570, %v598
        %v620 = vmul.f32 %v587, %v478
        %v621 = vmul.f32 %v588, %v480
        %v622 = vmul.f32 %v589, %v484
        %v623 = vmul.f32 %v590, %v486
        %v624 = vadd.f32 %v616, %v620
        %v625 = vadd.f32 %v617, %v621
        %v626 = vadd.f32 %v618, %v622
        %v627 = vadd.f32 %v619, %v623
        %v628 = vrcp.pop 48.0
        %v629 = vmul.f32 %v624, %v628
        %v630 = vmul.f32 %v625, %v628
        %v631 = vmul.f32 %v626, %v628
        %v632 = vmul.f32 %v627, %v628
        %v633 = vadd.f32 %v612, %v629
        %v634 = vadd.f32 %v613, %v630
        %v635 = vadd.f32 %v614, %v631
        %v636 = vadd.f32 %v615, %v632
        %637 = vst [vmem:[%s360] sm:$0xff] %v633
        %638 = vst [vmem:[%s360 + $0x8] sm:$0xff] %v634
        %639 = vst [vmem:[%s360 + $0x10] sm:$0xff] %v635
        %640 = vst [vmem:[%s360 + $0x18] sm:$0xff] %v636
        %s641 = sand.u32 %s220, 1
        %s642 = scalar_lea.sflag [#allocation5], %s641
        %s643 = sand.u32 %s220, 1
        %s644 = smul.addr %s643, 16
        %s645 = scalar_lea.vmem [#allocation4], %s644
        %s646 = sand.u32 %s246, 1
        %s647 = scalar_lea.sflag [#allocation7], %s646
        %s648 = sand.u32 %s246, 1
        %s649 = smul.addr %s648, 32
        %s650 = scalar_lea.vmem [#allocation6], %s649
        // Predicated region
        $region60: #{tpu_custom_call.1} parent=51 // pred_check
          %p651 = pneg %p230
        $region61: #{tpu_custom_call.1} parent=51 // pred_check_branch
          %653 = sbr.rel (%p651) target = $region63
        $region62: #{tpu_custom_call.1} parent=51 // pred_region
          %s654 = smul.u32 2, %s34
          %s656 = ssub.s32 256, 256
          %657 = vsyncadd %s642, %s656
          %s658 = smul.addr %s654, 128
          %s659 = scalar_lea.hbm %s9, %s658
          %s660 = sshll.u32 %s645, 4
          %s661 = int_to_ptr.vmem [resolvable:$true] %s660
          %666 = dma.vmem_to_hbm [thread:$0]  %s661, 256, %s659, %s642, 128, 128, 8
        $region63: #{tpu_custom_call.1} parent=51 // pred_fallthru
          _
        // Predicated region
        $region64: #{tpu_custom_call.1} parent=51 // pred_check
          %p667 = pneg %p256
        $region65: #{tpu_custom_call.1} parent=51 // pred_check_branch
          %669 = sbr.rel (%p667) target = $region67
        $region66: #{tpu_custom_call.1} parent=51 // pred_region
          %s670 = smul.u32 2, %s34
          %s672 = ssub.s32 512, 512
          %673 = vsyncadd %s647, %s672
          %s674 = smul.addr %s670, 2
          %s675 = smul.addr %s674, 128
          %s676 = scalar_lea.hbm %s10, %s675
          %s677 = sshll.u32 %s650, 4
          %s678 = int_to_ptr.vmem [resolvable:$true] %s677
          %683 = dma.vmem_to_hbm [thread:$0]  %s678, 512, %s676, %s647, 256, 256, 16
        $region67: #{tpu_custom_call.1} parent=51 // pred_fallthru
          _
      $region52: #{tpu_custom_call.1} parent=5 // pred_fallthru
        _
      %p684 = scmp.le.s32.totalorder 2, %s29
      // Predicated region
      $region68: #{tpu_custom_call.1} parent=5 // pred_check
        %p685 = pneg %p684
      $region69: #{tpu_custom_call.1} parent=5 // pred_check_branch
        %687 = sbr.rel (%p685) target = $region71
      $region70: #{tpu_custom_call.1} parent=5 // pred_region
        %s688 = ssub.s32 %s29, 2
        // Predicated region
        $region72: #{tpu_custom_call.1} parent=70 // pred_check
          %p689 = pneg %p236
        $region73: #{tpu_custom_call.1} parent=70 // pred_check_branch
          %691 = sbr.rel (%p689) target = $region75
        $region74: #{tpu_custom_call.1} parent=70 // pred_region
          %s692 = sand.u32 %s221, 1
          %s693 = scalar_lea.sflag [#allocation5], %s692
          %s694 = sand.u32 %s221, 1
          %s695 = smul.addr %s694, 16
          %s696 = scalar_lea.vmem [#allocation4], %s695
          %697 = dma.done %s693, 256
        $region75: #{tpu_custom_call.1} parent=70 // pred_fallthru
          _
        // Predicated region
        $region76: #{tpu_custom_call.1} parent=70 // pred_check
          %p698 = pneg %p262
        $region77: #{tpu_custom_call.1} parent=70 // pred_check_branch
          %700 = sbr.rel (%p698) target = $region79
        $region78: #{tpu_custom_call.1} parent=70 // pred_region
          %s701 = sand.u32 %s247, 1
          %s702 = scalar_lea.sflag [#allocation7], %s701
          %s703 = sand.u32 %s247, 1
          %s704 = smul.addr %s703, 32
          %s705 = scalar_lea.vmem [#allocation6], %s704
          %706 = dma.done %s702, 512
        $region79: #{tpu_custom_call.1} parent=70 // pred_fallthru
          _
      $region71: #{tpu_custom_call.1} parent=5 // pred_fallthru
        _
    $region6: #{tpu_custom_call.1} parent=1 // loop_footer
      %s33 = sadd.s32 1, %s29
    $region7: #{tpu_custom_call.1} parent=1 // loop_footer_branch
      %28 = sbr.rel target = $region3
    $region8: #{tpu_custom_call.1} parent=1 // loop_exit
      _
    %707 = vsyncpa [#allocation5], 1
    %s708 = scalar_lea.sflag [#allocation5], 1
    %709 = vsyncpa %s708, 1
    %710 = vsyncpa [#allocation7], 1
    %s711 = scalar_lea.sflag [#allocation7], 1
    %712 = vsyncpa %s711, 1

</llo_original>
